<compile_context>
chip_gen: v7x
topology: tpu7x:2x2x1
jax: 0.10.0
libtpu: 0.0.40
codegen_flags: <defaults>
</compile_context>

<pallas_src>
import math
import functools

import jax
import jax.numpy as jnp
from jax import lax
from jax.experimental import pallas as pl
from jax.experimental.pallas import tpu as pltpu

# ----------------------------- model dimensions ------------------------------
B_BATCH = 2
IMG_CH = 3
IMG_SIZE = 16           # cfg.image_size == clip_imsize (stand-in for 224)
VIS_DIM = 64            # clip_model.visual.output_dim (stand-in for 512)
CTX_DIM = 64            # clip_model.ln_final.weight.shape[0]
N_CTX = 4               # cfg.N_CTX
N_CLS = 3               # len(classnames)
SEQ_LEN = 16            # token context length (stand-in for CLIP's 77)
N_HEADS = 4
HEAD_DIM = CTX_DIM // N_HEADS
MLP_DIM = 4 * CTX_DIM
IMG_FLAT = IMG_CH * IMG_SIZE * IMG_SIZE
N_TOK = N_CLS * SEQ_LEN             # 48 rows per grid step in Kernel 2
R_ATT = N_TOK * N_HEADS             # 192 head-major attention rows
EPS_NORM = 1e-12        # epsilon for L2 norms (avoid Inf/NaN on zero vectors)


# --------------------------- in-kernel helper math ----------------------------
def _l2n(v):
    """L2-normalize along the last dim (with epsilon)."""
    return v * lax.rsqrt(jnp.sum(v * v, axis=-1, keepdims=True) + EPS_NORM)


def _layer_norm(v, g, b, eps=1e-5):
    v = v.astype(jnp.float32)
    mu = jnp.mean(v, axis=-1, keepdims=True)
    var = jnp.mean((v - mu) ** 2, axis=-1, keepdims=True)
    return (v - mu) * lax.rsqrt(var + eps) * g + b


# ------------------------ Kernel 1: fused image path --------------------------
def _image_path_kernel(clipweight, oriweight,
                       img_ref, vcw_ref, vcb_ref,
                       afw1c_ref, afw1s_ref, afb1_ref, afw2_ref, afb2_ref,
                       mw1_ref, mb1_ref, mw2_ref, mb2_ref,
                       o_ref):
    x = img_ref[...].astype(jnp.bfloat16)                              # (B, IMG_FLAT)
    # vis and CAT projections as ONE bf16 matmul (concatenated weights, 128 lanes)
    vc = jnp.dot(x, vcw_ref[...], preferred_element_type=jnp.float32) + vcb_ref[...]
    clip_n = _l2n(vc[:, :VIS_DIM])                                     # image_features (normalized)
    swin_n = _l2n(vc[:, VIS_DIM:])                                     # swin features (normalized)

    # AttentionFusion: Linear(2d,d) -> ReLU -> Linear(d,1) -> Sigmoid.
    # af_w1 is split into clip/swin halves so no in-kernel lane concat is needed.
    h = (jnp.dot(clip_n.astype(jnp.bfloat16), afw1c_ref[...], preferred_element_type=jnp.float32)
         + jnp.dot(swin_n.astype(jnp.bfloat16), afw1s_ref[...], preferred_element_type=jnp.float32)
         + afb1_ref[...])
    h = jnp.maximum(h, 0.0)
    aw = jax.nn.sigmoid(jnp.sum(h * afw2_ref[...], axis=-1, keepdims=True) + afb2_ref[...])  # (B,1)
    fused = aw * clip_n + (1.0 - aw) * swin_n
    fused = clipweight * clip_n + oriweight * fused                    # CoCoOp-CAT weighting

    # meta_net: Linear(vis, vis//16) -> ReLU -> Linear(vis//16, ctx)
    m = jnp.dot(fused.astype(jnp.bfloat16), mw1_ref[...], preferred_element_type=jnp.float32) + mb1_ref[...]
    m = jnp.maximum(m, 0.0)
    bias = jnp.dot(m.astype(jnp.bfloat16), mw2_ref[...], preferred_element_type=jnp.float32) + mb2_ref[...]

    # lane-dense (B, 128) output: [normalized image features | meta bias]
    o_ref[...] = jnp.concatenate([clip_n, bias], axis=-1).astype(o_ref.dtype)


def image_path(img_flat, p, clipweight, oriweight):
    B = img_flat.shape[0]
    bf = jnp.bfloat16
    vcw = jnp.concatenate([p['vis_w'], p['cat_w']], axis=1).astype(bf)  # (IMG_FLAT, 2*VIS)
    vcb = jnp.concatenate([p['vis_b'], p['cat_b']])[None, :]            # (1, 2*VIS) f32
    ins = [
        img_flat, vcw, vcb,
        p['af_w1'][:VIS_DIM].astype(bf), p['af_w1'][VIS_DIM:].astype(bf), p['af_b1'][None, :],
        p['af_w2'].reshape(1, VIS_DIM), p['af_b2'].reshape(1, 1),
        p['meta_w1'].astype(bf), p['meta_b1'][None, :],
        p['meta_w2'].astype(bf), p['meta_b2'][None, :],
    ]
    in_specs = [pl.BlockSpec(a.shape, lambda i: (0, 0)) for a in ins]
    # TODO(synk): for B >> 2 add a parallel batch grid axis (grid=(1,) pins one TC on v7x).
    out = pl.pallas_call(
        functools.partial(_image_path_kernel, clipweight, oriweight),
        grid=(1,),
        in_specs=in_specs,
        out_specs=pl.BlockSpec((B, 2 * VIS_DIM), lambda i: (0, 0)),
        out_shape=jax.ShapeDtypeStruct((B, 2 * VIS_DIM), jnp.float32),
    )(*ins)
    return out[:, :VIS_DIM], out[:, VIS_DIM:]                           # image_features, bias


# --------------- Kernel 2: fused text-encoder block (per image) ----------------
def _text_encoder_kernel(eot_ref,
                         base_ref, bias_ref, mask_ref, scale_ref,
                         ln1g, ln1b, wqkv, bqkv, wo, bo,
                         ln2g, ln2b, wfc, bfc, wcp, bcp,
                         lnfg, lnfb, tproj,
                         o_ref):
    bf = jnp.bfloat16
    # -- prompt assembly in-register: base prompts + per-image bias on ctx rows --
    bias = bias_ref[...]                                                # (1, D) f32
    row_ids = lax.broadcasted_iota(jnp.int32, (SEQ_LEN, 1), 0)
    ctx_sel = ((row_ids >= 1) & (row_ids < 1 + N_CTX)).astype(jnp.float32)   # (S, 1)
    x = base_ref[...] + (ctx_sel * bias)[None, :, :]                    # (n_cls, S, D)
    x = x.reshape(N_TOK, CTX_DIM)                                       # (48, 64) all prompts

    # -- x = x + attn(ln1(x)) : fused QKV, single head-batched attention --
    h = _layer_norm(x, ln1g[...], ln1b[...])
    qkv = jnp.dot(h.astype(bf), wqkv[...], preferred_element_type=jnp.float32) + bqkv[...]  # (48, 3D)
    # head-major rows via pure row-major reshape: (48, H*HD) -> (192, HD), row = (prompt, s, head)
    q = qkv[:, :CTX_DIM].reshape(R_ATT, HEAD_DIM)
    k = qkv[:, CTX_DIM:2 * CTX_DIM].reshape(R_ATT, HEAD_DIM)
    v = qkv[:, 2 * CTX_DIM:].reshape(R_ATT, HEAD_DIM)
    scale = 1.0 / math.sqrt(HEAD_DIM)
    s = lax.dot_general(q.astype(bf), k.astype(bf), (((1,), (1,)), ((), ())),
                        preferred_element_type=jnp.float32) * scale + mask_ref[...]   # (192, 192)
    s = s - jnp.max(s, axis=-1, keepdims=True)
    prob = jnp.exp(s)
    prob = prob * pl.reciprocal(jnp.sum(prob, axis=-1, keepdims=True), approx=True)
    att = jnp.dot(prob.astype(bf), v.astype(bf), preferred_element_type=jnp.float32)   # (192, 16)
    att = att.reshape(N_TOK, CTX_DIM)                                   # back to (48, 64)
    att = jnp.dot(att.astype(bf), wo[...], preferred_element_type=jnp.float32) + bo[...]
    x = x + att

    # -- x = x + mlp(ln2(x)) : QuickGELU MLP, 256-wide intermediate stays in VMEM --
    h2 = _layer_norm(x, ln2g[...], ln2b[...])
    h2 = jnp.dot(h2.astype(bf), wfc[...], preferred_element_type=jnp.float32) + bfc[...]
    h2 = h2 * jax.nn.sigmoid(1.702 * h2)
    h2 = jnp.dot(h2.astype(bf), wcp[...], preferred_element_type=jnp.float32) + bcp[...]
    x = x + h2

    # -- ln_final, EOT select (one-hot reduce over flat rows), project, L2-norm --
    xf = _layer_norm(x, lnfg[...], lnfb[...])                           # (48, 64)
    tok_ids = lax.broadcasted_iota(jnp.int32, (N_TOK, 1), 0)
    rows = []
    for c in range(N_CLS):                                              # static, 3 iterations
        sel = (tok_ids == (c * SEQ_LEN + eot_ref[c])).astype(jnp.float32)
        rows.append(jnp.sum(xf * sel, axis=0, keepdims=True))           # (1, D)
    eot = jnp.concatenate(rows, axis=0)                                 # (n_cls, D)
    tf = jnp.dot(eot.astype(bf), tproj[...], preferred_element_type=jnp.float32)   # (n_cls, VIS)
    tf = _l2n(tf) * scale_ref[0, 0]                                     # logit_scale folded in
    # lane-dense (n_cls, 128) store; upper 64 lanes are padding
    o_ref[0] = jnp.concatenate([tf, jnp.zeros_like(tf)], axis=-1).astype(o_ref.dtype)


def text_encoder_batched(p, base_prompts, bias, eot_idx, logit_scale):
    """Encode all n_cls prompts of every image; one parallel grid step per image."""
    B = bias.shape[0]
    bf = jnp.bfloat16

    # block-diagonal (prompt, head) causal mask over the 192 head-major rows
    r = jnp.arange(R_ATT)
    p_i = r // (SEQ_LEN * N_HEADS)
    s_i = (r // N_HEADS) % SEQ_LEN
    h_i = r % N_HEADS
    ok = ((p_i[:, None] == p_i[None, :]) & (h_i[:, None] == h_i[None, :])
          & (s_i[None, :] <= s_i[:, None]))
    attn_mask = jnp.where(ok, 0.0, -1e9).astype(jnp.float32)            # (192, 192)

    scale_arr = jnp.reshape(logit_scale, (1, 1)).astype(jnp.float32)
    wqkv = jnp.concatenate([p['wq'], p['wk'], p['wv']], axis=1).astype(bf)   # (D, 3D)
    bqkv = jnp.concatenate([p['bq'], p['bk'], p['bv']])[None, :]             # (1, 3D)

    ins = [
        base_prompts, bias, attn_mask, scale_arr,
        p['ln1_g'][None, :], p['ln1_b'][None, :],
        wqkv, bqkv,
        p['wo'].astype(bf), p['bo'][None, :],
        p['ln2_g'][None, :], p['ln2_b'][None, :],
        p['w_fc'].astype(bf), p['b_fc'][None, :],
        p['w_cproj'].astype(bf), p['b_cproj'][None, :],
        p['lnf_g'][None, :], p['lnf_b'][None, :],
        p['text_projection'].astype(bf),
    ]
    in_specs = [
        pl.BlockSpec((N_CLS, SEQ_LEN, CTX_DIM), lambda b, eot: (0, 0, 0)),   # base prompts
        pl.BlockSpec((1, CTX_DIM), lambda b, eot: (b, 0)),                   # per-image bias
        pl.BlockSpec((R_ATT, R_ATT), lambda b, eot: (0, 0)),                 # attention mask
        pl.BlockSpec(memory_space=pltpu.MemorySpace.SMEM),                   # logit_scale
    ]
    in_specs += [pl.BlockSpec(a.shape, lambda b, eot: (0, 0)) for a in ins[4:]]

    gs = pltpu.PrefetchScalarGridSpec(
        num_scalar_prefetch=1,
        grid=(B,),
        in_specs=in_specs,
        out_specs=pl.BlockSpec((1, N_CLS, 2 * VIS_DIM), lambda b, eot: (b, 0, 0)),
    )
    out = pl.pallas_call(
        _text_encoder_kernel,
        grid_spec=gs,
        out_shape=jax.ShapeDtypeStruct((B, N_CLS, 2 * VIS_DIM), jnp.float32),
        compiler_params=pltpu.CompilerParams(dimension_semantics=("parallel",)),
    )(eot_idx, *ins)
    return out[:, :, :VIS_DIM]          # (B, n_cls, VIS): normalized text feats * logit_scale


# ------------------------------- parameters ----------------------------------
def init_params(key):
    keys = iter(jax.random.split(key, 40))

    def dense(fan_in, fan_out, scale=None):
        if scale is None:
            scale = 1.0 / math.sqrt(fan_in)
        return jax.random.normal(next(keys), (fan_in, fan_out), jnp.float32) * scale

    def zeros(n):
        return jnp.zeros((n,), jnp.float32)

    p = {}
    # TODO(synk): clip_model.visual (ViT image encoder) replaced by a linear projection stand-in.
    p['vis_w'] = dense(IMG_FLAT, VIS_DIM); p['vis_b'] = zeros(VIS_DIM)
    # TODO(synk): CAT (swin-like) transformer `cat_trans_module` replaced by a linear projection stand-in.
    p['cat_w'] = dense(IMG_FLAT, VIS_DIM); p['cat_b'] = zeros(VIS_DIM)
    # AttentionFusion(vis_dim): Linear(2d, d) -> ReLU -> Linear(d, 1) -> Sigmoid
    p['af_w1'] = dense(2 * VIS_DIM, VIS_DIM); p['af_b1'] = zeros(VIS_DIM)
    p['af_w2'] = dense(VIS_DIM, 1); p['af_b2'] = zeros(1)
    # meta_net: Linear(vis, vis//16) -> ReLU -> Linear(vis//16, ctx)
    p['meta_w1'] = dense(VIS_DIM, VIS_DIM // 16); p['meta_b1'] = zeros(VIS_DIM // 16)
    p['meta_w2'] = dense(VIS_DIM // 16, CTX_DIM); p['meta_b2'] = zeros(CTX_DIM)
    # learnable context vectors (std=0.02 as in the module)
    p['ctx'] = jax.random.normal(next(keys), (N_CTX, CTX_DIM), jnp.float32) * 0.02
    # synthetic token embedding of tokenized prompts -> prefix / suffix buffers
    emb = jax.random.normal(next(keys), (N_CLS, SEQ_LEN, CTX_DIM), jnp.float32) * 0.02
    p['token_prefix'] = emb[:, :1, :]                 # (n_cls, 1, d)  [SOS]
    p['token_suffix'] = emb[:, 1 + N_CTX:, :]         # (n_cls, *, d)  [class, EOT, pad]
    # synthetic tokenized prompts (argmax -> EOT position, like CLIP)
    tok = jnp.zeros((N_CLS, SEQ_LEN), jnp.int32)
    tok = tok.at[:, 0].set(1)
    for j in range(N_CTX):
        tok = tok.at[:, 1 + j].set(2 + j)
    tok = tok.at[:, 1 + N_CTX].set(jnp.arange(N_CLS, dtype=jnp.int32) + 100)
    tok = tok.at[:, 2 + N_CTX].set(9999)              # EOT token (largest id)
    p['tokenized_prompts'] = tok
    # TODO(synk): CLIP text transformer stands in as a single residual attention block.
    p['pos_emb'] = jax.random.normal(next(keys), (SEQ_LEN, CTX_DIM), jnp.float32) * 0.01
    p['ln1_g'] = jnp.ones((CTX_DIM,), jnp.float32); p['ln1_b'] = zeros(CTX_DIM)
    p['wq'] = dense(CTX_DIM, CTX_DIM); p['bq'] = zeros(CTX_DIM)
    p['wk'] = dense(CTX_DIM, CTX_DIM); p['bk'] = zeros(CTX_DIM)
    p['wv'] = dense(CTX_DIM, CTX_DIM); p['bv'] = zeros(CTX_DIM)
    p['wo'] = dense(CTX_DIM, CTX_DIM); p['bo'] = zeros(CTX_DIM)
    p['ln2_g'] = jnp.ones((CTX_DIM,), jnp.float32); p['ln2_b'] = zeros(CTX_DIM)
    p['w_fc'] = dense(CTX_DIM, MLP_DIM); p['b_fc'] = zeros(MLP_DIM)
    p['w_cproj'] = dense(MLP_DIM, CTX_DIM); p['b_cproj'] = zeros(CTX_DIM)
    p['lnf_g'] = jnp.ones((CTX_DIM,), jnp.float32); p['lnf_b'] = zeros(CTX_DIM)
    p['text_projection'] = dense(CTX_DIM, VIS_DIM)
    p['logit_scale'] = jnp.asarray(math.log(1.0 / 0.07), jnp.float32)
    cfg = {'clipweight': 0.7, 'oriweight': 0.3}
    return p, cfg


# ------------------------------ forward pass ----------------------------------
def custom_clip_forward(params, cfg, image):
    """CustomCLIP.forward (eval path) -> logits of shape (B, n_cls)."""
    B = image.shape[0]
    img_flat = image.reshape(B, -1).astype(jnp.float32)
    logit_scale = jnp.exp(params['logit_scale'])

    # Kernel 1: image encoder + CAT + AttentionFusion + CoCoOp weighting + meta_net
    image_features, bias = image_path(img_flat, params,
                                      cfg['clipweight'], cfg['oriweight'])

    # Batch-independent base prompts: [prefix | ctx | suffix] + pos_emb (n_cls, S, D).
    # The per-image bias is added to the ctx rows *inside* Kernel 2.
    ctx_b = jnp.broadcast_to(params['ctx'][None], (N_CLS, N_CTX, CTX_DIM))
    base_prompts = jnp.concatenate([params['token_prefix'], ctx_b, params['token_suffix']], axis=1)
    base_prompts = (base_prompts + params['pos_emb'][None]).astype(jnp.float32)

    eot_idx = jnp.argmax(params['tokenized_prompts'], axis=-1).astype(jnp.int32)  # (n_cls,)

    # Kernel 2: all prompts of each image in one grid step; text features come back
    # already L2-normalized and pre-scaled by logit_scale (Kernel 3 was folded away).
    text_feats = text_encoder_batched(params, base_prompts, bias, eot_idx, logit_scale)

    # Cosine logits: trivial contraction, done as a plain einsum in the wrapper.
    logits = jnp.einsum('bd,bnd->bn', image_features, text_feats)        # (B, n_cls)
    return logits


# ---------------------------------- main --------------------------------------
if __name__ == "__main__":
    key = jax.random.PRNGKey(0)
    k_img, k_param = jax.random.split(key)
    image = jax.random.normal(k_img, (B_BATCH, IMG_CH, IMG_SIZE, IMG_SIZE), jnp.float32)
    params, cfg = init_params(k_param)

    logits = custom_clip_forward(params, cfg, image)
    logits = jax.block_until_ready(logits)
    assert logits.shape == (B_BATCH, N_CLS)
    assert bool(jnp.all(jnp.isfinite(logits)))
    print("KERNEL_OK")
</pallas_src>

<mosaic_0001>
module attributes {stable_mosaic.version = 11 : i64} {
  func.func @_image_path_kernel(%arg0: i32, %arg1: memref<2x768xf32, #tpu.memory_space<vmem>>, %arg2: memref<768x128xbf16, #tpu.memory_space<vmem>>, %arg3: memref<1x128xf32, #tpu.memory_space<vmem>>, %arg4: memref<64x64xbf16, #tpu.memory_space<vmem>>, %arg5: memref<64x64xbf16, #tpu.memory_space<vmem>>, %arg6: memref<1x64xf32, #tpu.memory_space<vmem>>, %arg7: memref<1x64xf32, #tpu.memory_space<vmem>>, %arg8: memref<1x1xf32, #tpu.memory_space<vmem>>, %arg9: memref<64x4xbf16, #tpu.memory_space<vmem>>, %arg10: memref<1x4xf32, #tpu.memory_space<vmem>>, %arg11: memref<4x64xbf16, #tpu.memory_space<vmem>>, %arg12: memref<1x64xf32, #tpu.memory_space<vmem>>, %arg13: memref<2x128xf32, #tpu.memory_space<vmem>>) attributes {dimension_semantics = [#tpu.dimension_semantics<arbitrary>], iteration_bounds = array<i64: 1>, scalar_prefetch = 0 : i64, scratch_operands = 0 : i64, tpu.core_type = #tpu.core_type<tc>, window_params = [{pipeline_mode = #tpu.pipeline_mode<synchronous>, transform_indices = @transform_0, window_bounds = array<i64: 2, 768>}, {pipeline_mode = #tpu.pipeline_mode<synchronous>, transform_indices = @transform_1, window_bounds = array<i64: 768, 128>}, {pipeline_mode = #tpu.pipeline_mode<synchronous>, transform_indices = @transform_2, window_bounds = array<i64: 1, 128>}, {pipeline_mode = #tpu.pipeline_mode<synchronous>, transform_indices = @transform_3, window_bounds = array<i64: 64, 64>}, {pipeline_mode = #tpu.pipeline_mode<synchronous>, transform_indices = @transform_4, window_bounds = array<i64: 64, 64>}, {pipeline_mode = #tpu.pipeline_mode<synchronous>, transform_indices = @transform_5, window_bounds = array<i64: 1, 64>}, {pipeline_mode = #tpu.pipeline_mode<synchronous>, transform_indices = @transform_6, window_bounds = array<i64: 1, 64>}, {pipeline_mode = #tpu.pipeline_mode<synchronous>, transform_indices = @transform_7, window_bounds = array<i64: 1, 1>}, {pipeline_mode = #tpu.pipeline_mode<synchronous>, transform_indices = @transform_8, window_bounds = array<i64: 64, 4>}, {pipeline_mode = #tpu.pipeline_mode<synchronous>, transform_indices = @transform_9, window_bounds = array<i64: 1, 4>}, {pipeline_mode = #tpu.pipeline_mode<synchronous>, transform_indices = @transform_10, window_bounds = array<i64: 4, 64>}, {pipeline_mode = #tpu.pipeline_mode<synchronous>, transform_indices = @transform_11, window_bounds = array<i64: 1, 64>}, {pipeline_mode = #tpu.pipeline_mode<synchronous>, transform_indices = @transform_12, window_bounds = array<i64: 2, 128>}]} {
    %c0 = arith.constant 0 : index
    %c0_0 = arith.constant 0 : index
    %0 = vector.load %arg1[%c0, %c0_0] : memref<2x768xf32, #tpu.memory_space<vmem>>, vector<2x768xf32>
    %1 = arith.truncf %0 : vector<2x768xf32> to vector<2x768xbf16>
    %c0_1 = arith.constant 0 : index
    %c0_2 = arith.constant 0 : index
    %2 = vector.load %arg2[%c0_1, %c0_2] : memref<768x128xbf16, #tpu.memory_space<vmem>>, vector<768x128xbf16>
    %cst = arith.constant dense<0.000000e+00> : vector<2x128xf32>
    %3 = tpu.matmul %1, %2, %cst {dimension_numbers = #tpu.dot_dimension_numbers<[1], [0], [0], [1], [0, 0, 1, 1], [], []>} : vector<2x768xbf16>, vector<768x128xbf16>, vector<2x128xf32> -> vector<2x128xf32>
    %c0_3 = arith.constant 0 : index
    %c0_4 = arith.constant 0 : index
    %4 = vector.load %arg3[%c0_3, %c0_4] : memref<1x128xf32, #tpu.memory_space<vmem>>, vector<1x128xf32>
    %5 = vector.broadcast %4 : vector<1x128xf32> to vector<2x128xf32>
    %6 = arith.addf %3, %5 : vector<2x128xf32>
    %7 = vector.extract_strided_slice %6 {offsets = [0, 0], sizes = [2, 64], strides = [1, 1]} : vector<2x128xf32> to vector<2x64xf32>
    %8 = arith.mulf %7, %7 : vector<2x64xf32>
    %cst_5 = arith.constant dense<0.000000e+00> : vector<2xf32>
    %9 = vector.multi_reduction <add>, %8, %cst_5 [1] : vector<2x64xf32> to vector<2xf32>
    %10 = vector.shape_cast %9 : vector<2xf32> to vector<2x1xf32>
    %cst_6 = arith.constant 9.99999996E-13 : f32
    %11 = vector.broadcast %cst_6 : f32 to vector<2x1xf32>
    %12 = arith.addf %10, %11 : vector<2x1xf32>
    %13 = math.rsqrt %12 : vector<2x1xf32>
    %14 = vector.broadcast %13 : vector<2x1xf32> to vector<2x64xf32>
    %15 = arith.mulf %7, %14 : vector<2x64xf32>
    %16 = vector.extract_strided_slice %6 {offsets = [0, 64], sizes = [2, 64], strides = [1, 1]} : vector<2x128xf32> to vector<2x64xf32>
    %17 = arith.mulf %16, %16 : vector<2x64xf32>
    %cst_7 = arith.constant dense<0.000000e+00> : vector<2xf32>
    %18 = vector.multi_reduction <add>, %17, %cst_7 [1] : vector<2x64xf32> to vector<2xf32>
    %19 = vector.shape_cast %18 : vector<2xf32> to vector<2x1xf32>
    %cst_8 = arith.constant 9.99999996E-13 : f32
    %20 = vector.broadcast %cst_8 : f32 to vector<2x1xf32>
    %21 = arith.addf %19, %20 : vector<2x1xf32>
    %22 = math.rsqrt %21 : vector<2x1xf32>
    %23 = vector.broadcast %22 : vector<2x1xf32> to vector<2x64xf32>
    %24 = arith.mulf %16, %23 : vector<2x64xf32>
    %25 = arith.truncf %15 : vector<2x64xf32> to vector<2x64xbf16>
    %c0_9 = arith.constant 0 : index
    %c0_10 = arith.constant 0 : index
    %26 = vector.load %arg4[%c0_9, %c0_10] : memref<64x64xbf16, #tpu.memory_space<vmem>>, vector<64x64xbf16>
    %cst_11 = arith.constant dense<0.000000e+00> : vector<2x64xf32>
    %27 = tpu.matmul %25, %26, %cst_11 {dimension_numbers = #tpu.dot_dimension_numbers<[1], [0], [0], [1], [0, 0, 1, 1], [], []>} : vector<2x64xbf16>, vector<64x64xbf16>, vector<2x64xf32> -> vector<2x64xf32>
    %28 = arith.truncf %24 : vector<2x64xf32> to vector<2x64xbf16>
    %c0_12 = arith.constant 0 : index
    %c0_13 = arith.constant 0 : index
    %29 = vector.load %arg5[%c0_12, %c0_13] : memref<64x64xbf16, #tpu.memory_space<vmem>>, vector<64x64xbf16>
    %cst_14 = arith.constant dense<0.000000e+00> : vector<2x64xf32>
    %30 = tpu.matmul %28, %29, %cst_14 {dimension_numbers = #tpu.dot_dimension_numbers<[1], [0], [0], [1], [0, 0, 1, 1], [], []>} : vector<2x64xbf16>, vector<64x64xbf16>, vector<2x64xf32> -> vector<2x64xf32>
    %31 = arith.addf %27, %30 : vector<2x64xf32>
    %c0_15 = arith.constant 0 : index
    %c0_16 = arith.constant 0 : index
    %32 = vector.load %arg6[%c0_15, %c0_16] : memref<1x64xf32, #tpu.memory_space<vmem>>, vector<1x64xf32>
    %33 = vector.broadcast %32 : vector<1x64xf32> to vector<2x64xf32>
    %34 = arith.addf %31, %33 : vector<2x64xf32>
    %cst_17 = arith.constant 0.000000e+00 : f32
    %35 = vector.broadcast %cst_17 : f32 to vector<2x64xf32>
    %36 = arith.maximumf %34, %35 : vector<2x64xf32>
    %c0_18 = arith.constant 0 : index
    %c0_19 = arith.constant 0 : index
    %37 = vector.load %arg7[%c0_18, %c0_19] : memref<1x64xf32, #tpu.memory_space<vmem>>, vector<1x64xf32>
    %38 = vector.broadcast %37 : vector<1x64xf32> to vector<2x64xf32>
    %39 = arith.mulf %36, %38 : vector<2x64xf32>
    %cst_20 = arith.constant dense<0.000000e+00> : vector<2xf32>
    %40 = vector.multi_reduction <add>, %39, %cst_20 [1] : vector<2x64xf32> to vector<2xf32>
    %41 = vector.shape_cast %40 : vector<2xf32> to vector<2x1xf32>
    %c0_21 = arith.constant 0 : index
    %c0_22 = arith.constant 0 : index
    %42 = vector.load %arg8[%c0_21, %c0_22] : memref<1x1xf32, #tpu.memory_space<vmem>>, vector<1x1xf32>
    %43 = vector.broadcast %42 : vector<1x1xf32> to vector<2x1xf32>
    %44 = arith.addf %41, %43 : vector<2x1xf32>
    %45 = arith.negf %44 : vector<2x1xf32>
    %46 = math.exp %45 : vector<2x1xf32>
    %cst_23 = arith.constant 1.000000e+00 : f32
    %47 = vector.broadcast %cst_23 : f32 to vector<2x1xf32>
    %48 = arith.addf %47, %46 : vector<2x1xf32>
    %49 = arith.divf %47, %48 : vector<2x1xf32>
    %50 = vector.broadcast %49 : vector<2x1xf32> to vector<2x64xf32>
    %51 = arith.mulf %50, %15 : vector<2x64xf32>
    %cst_24 = arith.constant 1.000000e+00 : f32
    %52 = vector.broadcast %cst_24 : f32 to vector<2x1xf32>
    %53 = arith.subf %52, %49 : vector<2x1xf32>
    %54 = vector.broadcast %53 : vector<2x1xf32> to vector<2x64xf32>
    %55 = arith.mulf %54, %24 : vector<2x64xf32>
    %56 = arith.addf %51, %55 : vector<2x64xf32>
    %cst_25 = arith.constant 0.699999988 : f32
    %57 = vector.broadcast %cst_25 : f32 to vector<2x64xf32>
    %58 = arith.mulf %57, %15 : vector<2x64xf32>
    %cst_26 = arith.constant 3.000000e-01 : f32
    %59 = vector.broadcast %cst_26 : f32 to vector<2x64xf32>
    %60 = arith.mulf %59, %56 : vector<2x64xf32>
    %61 = arith.addf %58, %60 : vector<2x64xf32>
    %62 = arith.truncf %61 : vector<2x64xf32> to vector<2x64xbf16>
    %c0_27 = arith.constant 0 : index
    %c0_28 = arith.constant 0 : index
    %63 = vector.load %arg9[%c0_27, %c0_28] : memref<64x4xbf16, #tpu.memory_space<vmem>>, vector<64x4xbf16>
    %cst_29 = arith.constant dense<0.000000e+00> : vector<2x4xf32>
    %64 = tpu.matmul %62, %63, %cst_29 {dimension_numbers = #tpu.dot_dimension_numbers<[1], [0], [0], [1], [0, 0, 1, 1], [], []>} : vector<2x64xbf16>, vector<64x4xbf16>, vector<2x4xf32> -> vector<2x4xf32>
    %c0_30 = arith.constant 0 : index
    %c0_31 = arith.constant 0 : index
    %65 = vector.load %arg10[%c0_30, %c0_31] : memref<1x4xf32, #tpu.memory_space<vmem>>, vector<1x4xf32>
    %66 = vector.broadcast %65 : vector<1x4xf32> to vector<2x4xf32>
    %67 = arith.addf %64, %66 : vector<2x4xf32>
    %cst_32 = arith.constant 0.000000e+00 : f32
    %68 = vector.broadcast %cst_32 : f32 to vector<2x4xf32>
    %69 = arith.maximumf %67, %68 : vector<2x4xf32>
    %70 = arith.truncf %69 : vector<2x4xf32> to vector<2x4xbf16>
    %c0_33 = arith.constant 0 : index
    %c0_34 = arith.constant 0 : index
    %71 = vector.load %arg11[%c0_33, %c0_34] : memref<4x64xbf16, #tpu.memory_space<vmem>>, vector<4x64xbf16>
    %cst_35 = arith.constant dense<0.000000e+00> : vector<2x64xf32>
    %72 = tpu.matmul %70, %71, %cst_35 {dimension_numbers = #tpu.dot_dimension_numbers<[1], [0], [0], [1], [0, 0, 1, 1], [], []>} : vector<2x4xbf16>, vector<4x64xbf16>, vector<2x64xf32> -> vector<2x64xf32>
    %c0_36 = arith.constant 0 : index
    %c0_37 = arith.constant 0 : index
    %73 = vector.load %arg12[%c0_36, %c0_37] : memref<1x64xf32, #tpu.memory_space<vmem>>, vector<1x64xf32>
    %74 = vector.broadcast %73 : vector<1x64xf32> to vector<2x64xf32>
    %75 = arith.addf %72, %74 : vector<2x64xf32>
    %76 = tpu.concatenate %15, %75 in 1 : vector<2x64xf32>, vector<2x64xf32> -> vector<2x128xf32>
    %c0_38 = arith.constant 0 : index
    %c0_39 = arith.constant 0 : index
    %77 = vector.load %arg13[%c0_38, %c0_39] : memref<2x128xf32, #tpu.memory_space<vmem>>, vector<2x128xf32>
    tpu.vector_store %arg13[%c0_38, %c0_39], %76 {strides = array<i32>} : memref<2x128xf32, #tpu.memory_space<vmem>>, vector<2x128xf32>,
    return
  }
  func.func @transform_0(%arg0: i32) -> (i32, i32) {
    %c0_i32 = arith.constant 0 : i32
    %c0_i32_0 = arith.constant 0 : i32
    %c0_i32_1 = arith.constant 0 : i32
    return %c0_i32, %c0_i32_0 : i32, i32
  }
  func.func @transform_1(%arg0: i32) -> (i32, i32) {
    %c0_i32 = arith.constant 0 : i32
    %c0_i32_0 = arith.constant 0 : i32
    %c0_i32_1 = arith.constant 0 : i32
    return %c0_i32, %c0_i32_0 : i32, i32
  }
  func.func @transform_2(%arg0: i32) -> (i32, i32) {
    %c0_i32 = arith.constant 0 : i32
    %c0_i32_0 = arith.constant 0 : i32
    %c0_i32_1 = arith.constant 0 : i32
    return %c0_i32, %c0_i32_0 : i32, i32
  }
  func.func @transform_3(%arg0: i32) -> (i32, i32) {
    %c0_i32 = arith.constant 0 : i32
    %c0_i32_0 = arith.constant 0 : i32
    %c0_i32_1 = arith.constant 0 : i32
    return %c0_i32, %c0_i32_0 : i32, i32
  }
  func.func @transform_4(%arg0: i32) -> (i32, i32) {
    %c0_i32 = arith.constant 0 : i32
    %c0_i32_0 = arith.constant 0 : i32
    %c0_i32_1 = arith.constant 0 : i32
    return %c0_i32, %c0_i32_0 : i32, i32
  }
  func.func @transform_5(%arg0: i32) -> (i32, i32) {
    %c0_i32 = arith.constant 0 : i32
    %c0_i32_0 = arith.constant 0 : i32
    %c0_i32_1 = arith.constant 0 : i32
    return %c0_i32, %c0_i32_0 : i32, i32
  }
  func.func @transform_6(%arg0: i32) -> (i32, i32) {
    %c0_i32 = arith.constant 0 : i32
    %c0_i32_0 = arith.constant 0 : i32
    %c0_i32_1 = arith.constant 0 : i32
    return %c0_i32, %c0_i32_0 : i32, i32
  }
  func.func @transform_7(%arg0: i32) -> (i32, i32) {
    %c0_i32 = arith.constant 0 : i32
    %c0_i32_0 = arith.constant 0 : i32
    %c0_i32_1 = arith.constant 0 : i32
    return %c0_i32, %c0_i32_0 : i32, i32
  }
  func.func @transform_8(%arg0: i32) -> (i32, i32) {
    %c0_i32 = arith.constant 0 : i32
    %c0_i32_0 = arith.constant 0 : i32
    %c0_i32_1 = arith.constant 0 : i32
    return %c0_i32, %c0_i32_0 : i32, i32
  }
  func.func @transform_9(%arg0: i32) -> (i32, i32) {
    %c0_i32 = arith.constant 0 : i32
    %c0_i32_0 = arith.constant 0 : i32
    %c0_i32_1 = arith.constant 0 : i32
    return %c0_i32, %c0_i32_0 : i32, i32
  }
  func.func @transform_10(%arg0: i32) -> (i32, i32) {
    %c0_i32 = arith.constant 0 : i32
    %c0_i32_0 = arith.constant 0 : i32
    %c0_i32_1 = arith.constant 0 : i32
    return %c0_i32, %c0_i32_0 : i32, i32
  }
  func.func @transform_11(%arg0: i32) -> (i32, i32) {
    %c0_i32 = arith.constant 0 : i32
    %c0_i32_0 = arith.constant 0 : i32
    %c0_i32_1 = arith.constant 0 : i32
    return %c0_i32, %c0_i32_0 : i32, i32
  }
  func.func @transform_12(%arg0: i32) -> (i32, i32) {
    %c0_i32 = arith.constant 0 : i32
    %c0_i32_0 = arith.constant 0 : i32
    %c0_i32_1 = arith.constant 0 : i32
    return %c0_i32, %c0_i32_0 : i32, i32
  }
}

</mosaic_0001>

<llo_original>
// kernel: tpu_custom_call.1
$region0: #{tpu_custom_call.1}
  #allocation0 [shape = 'u32[]', space=smem, size = 0x4, offset = 0x4, fixed_abs, tag = 'smem constant byte address 0x4 - core index']
  #allocation1 [shape = 'u32[144,128]{1,0:T(1,128)}', space=vmem, size = 0x12000, scoped, tag = 'internal scratch']
  #allocation2 [shape = 'f32[1,1]{1,0:T(1,128)S(1)}', space=vmem, size = 0x200, scoped, tag = 'scoped memory for tpu_custom_call.1']
  %s0 = inlined_call_operand.vmem [shape: f32[2,768], index: 0, kind: input, shape index: {}]
  %s1 = inlined_call_operand.hbm [shape: bf16[768,128], index: 1, kind: input, shape index: {}]
  %s2 = inlined_call_operand.vmem [shape: f32[1,128], index: 2, kind: input, shape index: {}]
  %s3 = inlined_call_operand.vmem [shape: bf16[64,64], index: 3, kind: input, shape index: {}]
  %s4 = inlined_call_operand.hbm [shape: bf16[64,64], index: 4, kind: input, shape index: {}]
  %s5 = inlined_call_operand.vmem [shape: f32[1,64], index: 5, kind: input, shape index: {}]
  %s6 = inlined_call_operand.vmem [shape: f32[1,64], index: 6, kind: input, shape index: {}]
  %s7 = inlined_call_operand.<no memory space> [shape: f32[1,1], index: 7, kind: input, shape index: {}]
  %s8 = inlined_call_operand.vmem [shape: bf16[64,4], index: 8, kind: input, shape index: {}]
  %s9 = inlined_call_operand.vmem [shape: f32[1,4], index: 9, kind: input, shape index: {}]
  %s10 = inlined_call_operand.vmem [shape: bf16[4,64], index: 10, kind: input, shape index: {}]
  %s11 = inlined_call_operand.vmem [shape: f32[1,64], index: 11, kind: input, shape index: {}]
  %s12 = inlined_call_operand.hbm [shape: f32[2,128], index: 12, kind: output, shape index: {}]
  %s13 = sld [smem:[#allocation0]]
  $region66: #{tpu_custom_call.1} parent=0
    _
  %s15 = ssub.s32 1, %s13
  %s16 = scalar_select 0, %s15, %s13
  %v17 = vstv %s7
  %18 = vst [vmem:[#allocation2] sm:$0x1] %v17
  $region1: #{tpu_custom_call.1} parent=0
    #allocation3 [shape = 'u8[196608]{0}', space=vmem, size = 0x30000, scoped, tag = 'input window, operand 1, single buffered']
    #allocation4 [shape = 's32[1]{0}', space=sflag, size = 0x4, scoped, tag = 'scoped memory for tpu_custom_call.1']
    #allocation5 [shape = 's32[1]{0}', space=sflag, size = 0x4, scoped, tag = 'scoped memory for tpu_custom_call.1']
    #allocation6 [shape = 'u8[16384]{0}', space=vmem, size = 0x4000, scoped, tag = 'input window, operand 4, single buffered']
    #allocation7 [shape = 's32[1]{0}', space=sflag, size = 0x4, scoped, tag = 'scoped memory for tpu_custom_call.1']
    #allocation8 [shape = 'u8[1024]{0}', space=vmem, size = 0x400, scoped, tag = 'output window, operand 0, single buffered']
    %19 = vsyncpa [#allocation4], 0
    %20 = vsyncpa [#allocation7], 0
    %21 = vsyncpa [#allocation5], 0
    // Predicated region
    $region2: #{tpu_custom_call.1} parent=1 // pred_check
      _
    $region3: #{tpu_custom_call.1} parent=1 // pred_check_branch
      %23 = sbr.rel (0) target = $region5
    $region4: #{tpu_custom_call.1} parent=1 // pred_region
      _
    $region5: #{tpu_custom_call.1} parent=1 // pred_fallthru
      _
    // Predicated region
    $region6: #{tpu_custom_call.1} parent=1 // pred_check
      _
    $region7: #{tpu_custom_call.1} parent=1 // pred_check_branch
      %25 = sbr.rel (0) target = $region9
    $region8: #{tpu_custom_call.1} parent=1 // pred_region
      %s27 = ssub.s32 6144, 6144
      %28 = vsyncadd [#allocation4], %s27
      %s29 = sshll.u32 [#allocation3], 4
      %s30 = int_to_ptr.vmem [resolvable:$true] %s29
      %35 = dma.hbm_to_vmem [thread:$0]  %s1, 6144, %s30, [#allocation4], 64, 64, 4
    $region9: #{tpu_custom_call.1} parent=1 // pred_fallthru
      _
    // Predicated region
    $region10: #{tpu_custom_call.1} parent=1 // pred_check
      _
    $region11: #{tpu_custom_call.1} parent=1 // pred_check_branch
      %37 = sbr.rel (0) target = $region13
    $region12: #{tpu_custom_call.1} parent=1 // pred_region
      _
    $region13: #{tpu_custom_call.1} parent=1 // pred_fallthru
      _
    // Predicated region
    $region14: #{tpu_custom_call.1} parent=1 // pred_check
      _
    $region15: #{tpu_custom_call.1} parent=1 // pred_check_branch
      %39 = sbr.rel (0) target = $region17
    $region16: #{tpu_custom_call.1} parent=1 // pred_region
      _
    $region17: #{tpu_custom_call.1} parent=1 // pred_fallthru
      _
    // Predicated region
    $region18: #{tpu_custom_call.1} parent=1 // pred_check
      _
    $region19: #{tpu_custom_call.1} parent=1 // pred_check_branch
      %41 = sbr.rel (0) target = $region21
    $region20: #{tpu_custom_call.1} parent=1 // pred_region
      %s43 = ssub.s32 512, 512
      %44 = vsyncadd [#allocation7], %s43
      %s45 = sshll.u32 [#allocation6], 4
      %s46 = int_to_ptr.vmem [resolvable:$true] %s45
      %51 = dma.hbm_to_vmem [thread:$0]  %s4, 512, %s46, [#allocation7], 64, 64, 4
    $region21: #{tpu_custom_call.1} parent=1 // pred_fallthru
      _
    // Predicated region
    $region22: #{tpu_custom_call.1} parent=1 // pred_check
      _
    $region23: #{tpu_custom_call.1} parent=1 // pred_check_branch
      %53 = sbr.rel (0) target = $region25
    $region24: #{tpu_custom_call.1} parent=1 // pred_region
      _
    $region25: #{tpu_custom_call.1} parent=1 // pred_fallthru
      _
    // Predicated region
    $region26: #{tpu_custom_call.1} parent=1 // pred_check
      _
    $region27: #{tpu_custom_call.1} parent=1 // pred_check_branch
      %55 = sbr.rel (0) target = $region29
    $region28: #{tpu_custom_call.1} parent=1 // pred_region
      _
    $region29: #{tpu_custom_call.1} parent=1 // pred_fallthru
      _
    // Predicated region
    $region30: #{tpu_custom_call.1} parent=1 // pred_check
      _
    $region31: #{tpu_custom_call.1} parent=1 // pred_check_branch
      %57 = sbr.rel (0) target = $region33
    $region32: #{tpu_custom_call.1} parent=1 // pred_region
      _
    $region33: #{tpu_custom_call.1} parent=1 // pred_fallthru
      _
    // Predicated region
    $region34: #{tpu_custom_call.1} parent=1 // pred_check
      _
    $region35: #{tpu_custom_call.1} parent=1 // pred_check_branch
      %59 = sbr.rel (0) target = $region37
    $region36: #{tpu_custom_call.1} parent=1 // pred_region
      _
    $region37: #{tpu_custom_call.1} parent=1 // pred_fallthru
      _
    // Predicated region
    $region38: #{tpu_custom_call.1} parent=1 // pred_check
      _
    $region39: #{tpu_custom_call.1} parent=1 // pred_check_branch
      %61 = sbr.rel (0) target = $region41
    $region40: #{tpu_custom_call.1} parent=1 // pred_region
      _
    $region41: #{tpu_custom_call.1} parent=1 // pred_fallthru
      _
    // Predicated region
    $region42: #{tpu_custom_call.1} parent=1 // pred_check
      _
    $region43: #{tpu_custom_call.1} parent=1 // pred_check_branch
      %63 = sbr.rel (0) target = $region45
    $region44: #{tpu_custom_call.1} parent=1 // pred_region
      _
    $region45: #{tpu_custom_call.1} parent=1 // pred_fallthru
      _
    // Predicated region
    $region46: #{tpu_custom_call.1} parent=1 // pred_check
      _
    $region47: #{tpu_custom_call.1} parent=1 // pred_check_branch
      %65 = sbr.rel (0) target = $region49
    $region48: #{tpu_custom_call.1} parent=1 // pred_region
      _
    $region49: #{tpu_custom_call.1} parent=1 // pred_fallthru
      _
    // Predicated region
    $region50: #{tpu_custom_call.1} parent=1 // pred_check
      _
    $region51: #{tpu_custom_call.1} parent=1 // pred_check_branch
      %67 = sbr.rel (0) target = $region53
    $region52: #{tpu_custom_call.1} parent=1 // pred_region
      %68 = dma.done [#allocation4], 6144
    $region53: #{tpu_custom_call.1} parent=1 // pred_fallthru
      _
    // Predicated region
    $region54: #{tpu_custom_call.1} parent=1 // pred_check
      _
    $region55: #{tpu_custom_call.1} parent=1 // pred_check_branch
      %70 = sbr.rel (0) target = $region57
    $region56: #{tpu_custom_call.1} parent=1 // pred_region
      %71 = dma.done [#allocation7], 512
    $region57: #{tpu_custom_call.1} parent=1 // pred_fallthru
      _
    %v73 = vld [vmem:[%s0] sm:$0xff]
    %v74 = vld [vmem:[%s0 + $0x8] sm:$0xf]
    %v77 = vcombine.high %v73, %v73
    %v79 = vunpack.c.l.s4 1983009808
    %v80 = vunpack.c.0.s8 %v79
    %v81 = vlaneseq
    %v82 = vshrl.u32 %v81, 7
    %v83 = vsub.s32 %v80, %v82
    %v84 = vrot.slane %v73, %v83
    %v86 = vunpack.c.l.s4 1983009808
    %v87 = vunpack.c.0.s8 %v86
    %v88 = vlaneseq
    %v89 = vshrl.u32 %v88, 7
    %v90 = vsub.s32 %v87, %v89
    %v91 = vrot.slane %v77, %v90
    %v92 = vcombine.high %v84, %v84
    %v93 = vcombine.high %v91, %v91
    %v95 = vunpack.c.l.s4 1983009808
    %v96 = vunpack.c.0.s8 %v95
    %v97 = vlaneseq
    %v98 = vshrl.u32 %v97, 7
    %v99 = vsub.s32 %v96, %v98
    %v100 = vrot.slane %v74, %v99
    %v101 = vcombine.high %v100, %v100
    %v108 = vpack.c.bf16 %v84, %v84
    %v109 = vpack.c.bf16 %v92, %v92
    %v110 = vpack.c.bf16 %v91, %v91
    %v111 = vpack.c.bf16 %v93, %v93
    %v112 = vpack.c.bf16 %v100, %v100
    %v113 = vpack.c.bf16 %v101, %v101
    %v114 = vld [vmem:[#allocation3] sm:$0xf]
    %v115 = vld [vmem:[#allocation3 + $0x4] sm:$0xf]
    %v116 = vld [vmem:[#allocation3 + $0x8] sm:$0xf]
    %v117 = vld [vmem:[#allocation3 + $0xc] sm:$0xf]
    %v118 = vld [vmem:[#allocation3 + $0x10] sm:$0xf]
    %v119 = vld [vmem:[#allocation3 + $0x14] sm:$0xf]
    %v120 = vld [vmem:[#allocation3 + $0x18] sm:$0xf]
    %v121 = vld [vmem:[#allocation3 + $0x1c] sm:$0xf]
    %v122 = vld [vmem:[#allocation3 + $0x20] sm:$0xf]
    %v123 = vld [vmem:[#allocation3 + $0x24] sm:$0xf]
    %v124 = vld [vmem:[#allocation3 + $0x28] sm:$0xf]
    %v125 = vld [vmem:[#allocation3 + $0x2c] sm:$0xf]
    %v126 = vld [vmem:[#allocation3 + $0x30] sm:$0xf]
    %v127 = vld [vmem:[#allocation3 + $0x34] sm:$0xf]
    %v128 = vld [vmem:[#allocation3 + $0x38] sm:$0xf]
    %v129 = vld [vmem:[#allocation3 + $0x3c] sm:$0xf]
    %v130 = vld [vmem:[#allocation3 + $0x40] sm:$0xf]
    %v131 = vld [vmem:[#allocation3 + $0x44] sm:$0xf]
    %v132 = vld [vmem:[#allocation3 + $0x48] sm:$0xf]
    %v133 = vld [vmem:[#allocation3 + $0x4c] sm:$0xf]
    %v134 = vld [vmem:[#allocation3 + $0x50] sm:$0xf]
    %v135 = vld [vmem:[#allocation3 + $0x54] sm:$0xf]
    %v136 = vld [vmem:[#allocation3 + $0x58] sm:$0xf]
    %v137 = vld [vmem:[#allocation3 + $0x5c] sm:$0xf]
    %v138 = vld [vmem:[#allocation3 + $0x60] sm:$0xf]
    %v139 = vld [vmem:[#allocation3 + $0x64] sm:$0xf]
    %v140 = vld [vmem:[#allocation3 + $0x68] sm:$0xf]
    %v141 = vld [vmem:[#allocation3 + $0x6c] sm:$0xf]
    %v142 = vld [vmem:[#allocation3 + $0x70] sm:$0xf]
    %v143 = vld [vmem:[#allocation3 + $0x74] sm:$0xf]
    %v144 = vld [vmem:[#allocation3 + $0x78] sm:$0xf]
    %v145 = vld [vmem:[#allocation3 + $0x7c] sm:$0xf]
    %v146 = vld [vmem:[#allocation3 + $0x80] sm:$0xf]
    %v147 = vld [vmem:[#allocation3 + $0x84] sm:$0xf]
    %v148 = vld [vmem:[#allocation3 + $0x88] sm:$0xf]
    %v149 = vld [vmem:[#allocation3 + $0x8c] sm:$0xf]
    %v150 = vld [vmem:[#allocation3 + $0x90] sm:$0xf]
    %v151 = vld [vmem:[#allocation3 + $0x94] sm:$0xf]
    %v152 = vld [vmem:[#allocation3 + $0x98] sm:$0xf]
    %v153 = vld [vmem:[#allocation3 + $0x9c] sm:$0xf]
    %v154 = vld [vmem:[#allocation3 + $0xa0] sm:$0xf]
    %v155 = vld [vmem:[#allocation3 + $0xa4] sm:$0xf]
    %v156 = vld [vmem:[#allocation3 + $0xa8] sm:$0xf]
    %v157 = vld [vmem:[#allocation3 + $0xac] sm:$0xf]
    %v158 = vld [vmem:[#allocation3 + $0xb0] sm:$0xf]
    %v159 = vld [vmem:[#allocation3 + $0xb4] sm:$0xf]
    %v160 = vld [vmem:[#allocation3 + $0xb8] sm:$0xf]
    %v161 = vld [vmem:[#allocation3 + $0xbc] sm:$0xf]
    %v162 = vld [vmem:[#allocation3 + $0xc0] sm:$0xf]
    %v163 = vld [vmem:[#allocation3 + $0xc4] sm:$0xf]
    %v164 = vld [vmem:[#allocation3 + $0xc8] sm:$0xf]
    %v165 = vld [vmem:[#allocation3 + $0xcc] sm:$0xf]
    %v166 = vld [vmem:[#allocation3 + $0xd0] sm:$0xf]
    %v167 = vld [vmem:[#allocation3 + $0xd4] sm:$0xf]
    %v168 = vld [vmem:[#allocation3 + $0xd8] sm:$0xf]
    %v169 = vld [vmem:[#allocation3 + $0xdc] sm:$0xf]
    %v170 = vld [vmem:[#allocation3 + $0xe0] sm:$0xf]
    %v171 = vld [vmem:[#allocation3 + $0xe4] sm:$0xf]
    %v172 = vld [vmem:[#allocation3 + $0xe8] sm:$0xf]
    %v173 = vld [vmem:[#allocation3 + $0xec] sm:$0xf]
    %v174 = vld [vmem:[#allocation3 + $0xf0] sm:$0xf]
    %v175 = vld [vmem:[#allocation3 + $0xf4] sm:$0xf]
    %v176 = vld [vmem:[#allocation3 + $0xf8] sm:$0xf]
    %v177 = vld [vmem:[#allocation3 + $0xfc] sm:$0xf]
    %v178 = vld [vmem:[#allocation3 + $0x100] sm:$0xf]
    %v179 = vld [vmem:[#allocation3 + $0x104] sm:$0xf]
    %v180 = vld [vmem:[#allocation3 + $0x108] sm:$0xf]
    %v181 = vld [vmem:[#allocation3 + $0x10c] sm:$0xf]
    %v182 = vld [vmem:[#allocation3 + $0x110] sm:$0xf]
    %v183 = vld [vmem:[#allocation3 + $0x114] sm:$0xf]
    %v184 = vld [vmem:[#allocation3 + $0x118] sm:$0xf]
    %v185 = vld [vmem:[#allocation3 + $0x11c] sm:$0xf]
    %v186 = vld [vmem:[#allocation3 + $0x120] sm:$0xf]
    %v187 = vld [vmem:[#allocation3 + $0x124] sm:$0xf]
    %v188 = vld [vmem:[#allocation3 + $0x128] sm:$0xf]
    %v189 = vld [vmem:[#allocation3 + $0x12c] sm:$0xf]
    %v190 = vld [vmem:[#allocation3 + $0x130] sm:$0xf]
    %v191 = vld [vmem:[#allocation3 + $0x134] sm:$0xf]
    %v192 = vld [vmem:[#allocation3 + $0x138] sm:$0xf]
    %v193 = vld [vmem:[#allocation3 + $0x13c] sm:$0xf]
    %v194 = vld [vmem:[#allocation3 + $0x140] sm:$0xf]
    %v195 = vld [vmem:[#allocation3 + $0x144] sm:$0xf]
    %v196 = vld [vmem:[#allocation3 + $0x148] sm:$0xf]
    %v197 = vld [vmem:[#allocation3 + $0x14c] sm:$0xf]
    %v198 = vld [vmem:[#allocation3 + $0x150] sm:$0xf]
    %v199 = vld [vmem:[#allocation3 + $0x154] sm:$0xf]
    %v200 = vld [vmem:[#allocation3 + $0x158] sm:$0xf]
    %v201 = vld [vmem:[#allocation3 + $0x15c] sm:$0xf]
    %v202 = vld [vmem:[#allocation3 + $0x160] sm:$0xf]
    %v203 = vld [vmem:[#allocation3 + $0x164] sm:$0xf]
    %v204 = vld [vmem:[#allocation3 + $0x168] sm:$0xf]
    %v205 = vld [vmem:[#allocation3 + $0x16c] sm:$0xf]
    %v206 = vld [vmem:[#allocation3 + $0x170] sm:$0xf]
    %v207 = vld [vmem:[#allocation3 + $0x174] sm:$0xf]
    %v208 = vld [vmem:[#allocation3 + $0x178] sm:$0xf]
    %v209 = vld [vmem:[#allocation3 + $0x17c] sm:$0xf]
    %v210 = vld [vmem:[%s2] sm:$0x1]
    %v212 = vlaneseq
    %v213 = vshrl.u32 %v212, 7
    %v214 = vsub.s32 0, %v213
    %v215 = vrot.slane %v210, %v214
    %v313 = vunpack.c.l.b16 %v114
    %v314 = vunpack.c.l.b16 %v115
    %v315 = vunpack.c.l.b16 %v116
    %v316 = vunpack.c.l.b16 %v117
    %v317 = vunpack.c.l.b16 %v118
    %v318 = vunpack.c.l.b16 %v119
    %v319 = vunpack.c.l.b16 %v120
    %v320 = vunpack.c.l.b16 %v121
    %v321 = vunpack.c.l.b16 %v122
    %v322 = vunpack.c.l.b16 %v123
    %v323 = vunpack.c.l.b16 %v124
    %v324 = vunpack.c.l.b16 %v125
    %v325 = vunpack.c.l.b16 %v126
    %v326 = vunpack.c.l.b16 %v127
    %v327 = vunpack.c.l.b16 %v128
    %v328 = vunpack.c.l.b16 %v129
    %v329 = vunpack.c.l.b16 %v130
    %v330 = vunpack.c.l.b16 %v131
    %v331 = vunpack.c.l.b16 %v132
    %v332 = vunpack.c.l.b16 %v133
    %v333 = vunpack.c.l.b16 %v134
    %v334 = vunpack.c.l.b16 %v135
    %v335 = vunpack.c.l.b16 %v136
    %v336 = vunpack.c.l.b16 %v137
    %v337 = vunpack.c.l.b16 %v138
    %v338 = vunpack.c.l.b16 %v139
    %v339 = vunpack.c.l.b16 %v140
    %v340 = vunpack.c.l.b16 %v141
    %v341 = vunpack.c.l.b16 %v142
    %v342 = vunpack.c.l.b16 %v143
    %v343 = vunpack.c.l.b16 %v144
    %v344 = vunpack.c.l.b16 %v145
    %v345 = vunpack.c.l.b16 %v146
    %v346 = vunpack.c.l.b16 %v147
    %v347 = vunpack.c.l.b16 %v148
    %v348 = vunpack.c.l.b16 %v149
    %v349 = vunpack.c.l.b16 %v150
    %v350 = vunpack.c.l.b16 %v151
    %v351 = vunpack.c.l.b16 %v152
    %v352 = vunpack.c.l.b16 %v153
    %v353 = vunpack.c.l.b16 %v154
    %v354 = vunpack.c.l.b16 %v155
    %v355 = vunpack.c.l.b16 %v156
    %v356 = vunpack.c.l.b16 %v157
    %v357 = vunpack.c.l.b16 %v158
    %v358 = vunpack.c.l.b16 %v159
    %v359 = vunpack.c.l.b16 %v160
    %v360 = vunpack.c.l.b16 %v161
    %v361 = vunpack.c.l.b16 %v162
    %v362 = vunpack.c.l.b16 %v163
    %v363 = vunpack.c.l.b16 %v164
    %v364 = vunpack.c.l.b16 %v165
    %v365 = vunpack.c.l.b16 %v166
    %v366 = vunpack.c.l.b16 %v167
    %v367 = vunpack.c.l.b16 %v168
    %v368 = vunpack.c.l.b16 %v169
    %v369 = vunpack.c.l.b16 %v170
    %v370 = vunpack.c.l.b16 %v171
    %v371 = vunpack.c.l.b16 %v172
    %v372 = vunpack.c.l.b16 %v173
    %v373 = vunpack.c.l.b16 %v174
    %v374 = vunpack.c.l.b16 %v175
    %v375 = vunpack.c.l.b16 %v176
    %v376 = vunpack.c.l.b16 %v177
    %v377 = vunpack.c.l.b16 %v178
    %v378 = vunpack.c.l.b16 %v179
    %v379 = vunpack.c.l.b16 %v180
    %v380 = vunpack.c.l.b16 %v181
    %v381 = vunpack.c.l.b16 %v182
    %v382 = vunpack.c.l.b16 %v183
    %v383 = vunpack.c.l.b16 %v184
    %v384 = vunpack.c.l.b16 %v185
    %v385 = vunpack.c.l.b16 %v186
    %v386 = vunpack.c.l.b16 %v187
    %v387 = vunpack.c.l.b16 %v188
    %v388 = vunpack.c.l.b16 %v189
    %v389 = vunpack.c.l.b16 %v190
    %v390 = vunpack.c.l.b16 %v191
    %v391 = vunpack.c.l.b16 %v192
    %v392 = vunpack.c.l.b16 %v193
    %v393 = vunpack.c.l.b16 %v194
    %v394 = vunpack.c.l.b16 %v195
    %v395 = vunpack.c.l.b16 %v196
    %v396 = vunpack.c.l.b16 %v197
    %v397 = vunpack.c.l.b16 %v198
    %v398 = vunpack.c.l.b16 %v199
    %v399 = vunpack.c.l.b16 %v200
    %v400 = vunpack.c.l.b16 %v201
    %v401 = vunpack.c.l.b16 %v202
    %v402 = vunpack.c.l.b16 %v203
    %v403 = vunpack.c.l.b16 %v204
    %v404 = vunpack.c.l.b16 %v205
    %v405 = vunpack.c.l.b16 %v206
    %v406 = vunpack.c.l.b16 %v207
    %v407 = vunpack.c.l.b16 %v208
    %v408 = vunpack.c.l.b16 %v209
    %v409 = vpack.c.b16 %v314, %v313
    %v410 = vpack.c.b16 %v316, %v315
    %v411 = vpack.c.b16 %v318, %v317
    %v412 = vpack.c.b16 %v320, %v319
    %v413 = vpack.c.b16 %v322, %v321
    %v414 = vpack.c.b16 %v324, %v323
    %v415 = vpack.c.b16 %v326, %v325
    %v416 = vpack.c.b16 %v328, %v327
    %v417 = vpack.c.b16 %v330, %v329
    %v418 = vpack.c.b16 %v332, %v331
    %v419 = vpack.c.b16 %v334, %v333
    %v420 = vpack.c.b16 %v336, %v335
    %v421 = vpack.c.b16 %v338, %v337
    %v422 = vpack.c.b16 %v340, %v339
    %v423 = vpack.c.b16 %v342, %v341
    %v424 = vpack.c.b16 %v344, %v343
    %v425 = vpack.c.b16 %v346, %v345
    %v426 = vpack.c.b16 %v348, %v347
    %v427 = vpack.c.b16 %v350, %v349
    %v428 = vpack.c.b16 %v352, %v351
    %v429 = vpack.c.b16 %v354, %v353
    %v430 = vpack.c.b16 %v356, %v355
    %v431 = vpack.c.b16 %v358, %v357
    %v432 = vpack.c.b16 %v360, %v359
    %v433 = vpack.c.b16 %v362, %v361
    %v434 = vpack.c.b16 %v364, %v363
    %v435 = vpack.c.b16 %v366, %v365
    %v436 = vpack.c.b16 %v368, %v367
    %v437 = vpack.c.b16 %v370, %v369
    %v438 = vpack.c.b16 %v372, %v371
    %v439 = vpack.c.b16 %v374, %v373
    %v440 = vpack.c.b16 %v376, %v375
    %v441 = vpack.c.b16 %v378, %v377
    %v442 = vpack.c.b16 %v380, %v379
    %v443 = vpack.c.b16 %v382, %v381
    %v444 = vpack.c.b16 %v384, %v383
    %v445 = vpack.c.b16 %v386, %v385
    %v446 = vpack.c.b16 %v388, %v387
    %v447 = vpack.c.b16 %v390, %v389
    %v448 = vpack.c.b16 %v392, %v391
    %v449 = vpack.c.b16 %v394, %v393
    %v450 = vpack.c.b16 %v396, %v395
    %v451 = vpack.c.b16 %v398, %v397
    %v452 = vpack.c.b16 %v400, %v399
    %v453 = vpack.c.b16 %v402, %v401
    %v454 = vpack.c.b16 %v404, %v403
    %v455 = vpack.c.b16 %v406, %v405
    %v456 = vpack.c.b16 %v408, %v407
    %505 = vmatprep.subr.bf16.mxu0 0
    %506 = vmatpush1.bf16.msra.mxu0 %v409
    %507 = vmatprep.subr.bf16.mxu0 0
    %508 = vmatpush1.bf16.msra.mxu0 %v410
    %509 = vmatprep.subr.bf16.mxu0 0
    %510 = vmatpush1.bf16.msra.mxu0 %v411
    %511 = vmatprep.subr.bf16.mxu0 0
    %512 = vmatpush1.bf16.msra.mxu0 %v412
    %513 = vmatprep.subr.bf16.mxu0 0
    %514 = vmatpush1.bf16.msra.mxu0 %v413
    %515 = vmatprep.subr.bf16.mxu0 0
    %516 = vmatpush1.bf16.msra.mxu0 %v414
    %517 = vmatprep.subr.bf16.mxu0 0
    %518 = vmatpush1.bf16.msra.mxu0 %v415
    %519 = vmatprep.subr.bf16.mxu0 0
    %520 = vmatpush1.bf16.msra.mxu0 %v416
    %521 = vmatprep.subr.bf16.mxu0 0
    %522 = vmatpush1.bf16.msra.mxu0 %v417
    %523 = vmatprep.subr.bf16.mxu0 0
    %524 = vmatpush1.bf16.msra.mxu0 %v418
    %525 = vmatprep.subr.bf16.mxu0 0
    %526 = vmatpush1.bf16.msra.mxu0 %v419
    %527 = vmatprep.subr.bf16.mxu0 0
    %528 = vmatpush1.bf16.msra.mxu0 %v420
    %529 = vmatprep.subr.bf16.mxu0 0
    %530 = vmatpush1.bf16.msra.mxu0 %v421
    %531 = vmatprep.subr.bf16.mxu0 0
    %532 = vmatpush1.bf16.msra.mxu0 %v422
    %533 = vmatprep.subr.bf16.mxu0 0
    %534 = vmatpush1.bf16.msra.mxu0 %v423
    %535 = vmatprep.subr.bf16.mxu0 0
    %536 = vmatpush1.bf16.msra.mxu0 %v424
    %537 = vmatprep.mubr.bf16.mxu0 %v109
    %538 = vmatmul.mubr.bf16.gmra.mrb[0].mxu0 %v108
    %v539 = vpop.f32.mrb[0].mxu0
    %v540 = vadd.f32 %v215, %v539
    %v541 = vpop.f32.mrb[0].mxu0
    %v542 = vpop.f32.mrb[0].mxu0
    %v543 = vpop.f32.mrb[0].mxu0
    %544 = vdwg.mxu0
    %545 = vmatprep.subr.bf16.mxu0 0
    %546 = vmatpush1.bf16.msra.mxu0 %v425
    %547 = vmatprep.subr.bf16.mxu0 0
    %548 = vmatpush1.bf16.msra.mxu0 %v426
    %549 = vmatprep.subr.bf16.mxu0 0
    %550 = vmatpush1.bf16.msra.mxu0 %v427
    %551 = vmatprep.subr.bf16.mxu0 0
    %552 = vmatpush1.bf16.msra.mxu0 %v428
    %553 = vmatprep.subr.bf16.mxu0 0
    %554 = vmatpush1.bf16.msra.mxu0 %v429
    %555 = vmatprep.subr.bf16.mxu0 0
    %556 = vmatpush1.bf16.msra.mxu0 %v430
    %557 = vmatprep.subr.bf16.mxu0 0
    %558 = vmatpush1.bf16.msra.mxu0 %v431
    %559 = vmatprep.subr.bf16.mxu0 0
    %560 = vmatpush1.bf16.msra.mxu0 %v432
    %561 = vmatprep.subr.bf16.mxu0 0
    %562 = vmatpush1.bf16.msra.mxu0 %v433
    %563 = vmatprep.subr.bf16.mxu0 0
    %564 = vmatpush1.bf16.msra.mxu0 %v434
    %565 = vmatprep.subr.bf16.mxu0 0
    %566 = vmatpush1.bf16.msra.mxu0 %v435
    %567 = vmatprep.subr.bf16.mxu0 0
    %568 = vmatpush1.bf16.msra.mxu0 %v436
    %569 = vmatprep.subr.bf16.mxu0 0
    %570 = vmatpush1.bf16.msra.mxu0 %v437
    %571 = vmatprep.subr.bf16.mxu0 0
    %572 = vmatpush1.bf16.msra.mxu0 %v438
    %573 = vmatprep.subr.bf16.mxu0 0
    %574 = vmatpush1.bf16.msra.mxu0 %v439
    %575 = vmatprep.subr.bf16.mxu0 0
    %576 = vmatpush1.bf16.msra.mxu0 %v440
    %577 = vmatprep.mubr.bf16.mxu0 %v111
    %578 = vmatmul.mubr.bf16.gmra.mrb[0].mxu0 %v110
    %v579 = vpop.f32.mrb[0].mxu0
    %v580 = vadd.f32 %v540, %v579
    %v581 = vpop.f32.mrb[0].mxu0
    %v582 = vpop.f32.mrb[0].mxu0
    %v583 = vpop.f32.mrb[0].mxu0
    %584 = vdwg.mxu0
    %585 = vmatprep.subr.bf16.mxu0 0
    %586 = vmatpush1.bf16.msra.mxu0 %v441
    %587 = vmatprep.subr.bf16.mxu0 0
    %588 = vmatpush1.bf16.msra.mxu0 %v442
    %589 = vmatprep.subr.bf16.mxu0 0
    %590 = vmatpush1.bf16.msra.mxu0 %v443
    %591 = vmatprep.subr.bf16.mxu0 0
    %592 = vmatpush1.bf16.msra.mxu0 %v444
    %593 = vmatprep.subr.bf16.mxu0 0
    %594 = vmatpush1.bf16.msra.mxu0 %v445
    %595 = vmatprep.subr.bf16.mxu0 0
    %596 = vmatpush1.bf16.msra.mxu0 %v446
    %597 = vmatprep.subr.bf16.mxu0 0
    %598 = vmatpush1.bf16.msra.mxu0 %v447
    %599 = vmatprep.subr.bf16.mxu0 0
    %600 = vmatpush1.bf16.msra.mxu0 %v448
    %601 = vmatprep.subr.bf16.mxu0 0
    %602 = vmatpush1.bf16.msra.mxu0 %v449
    %603 = vmatprep.subr.bf16.mxu0 0
    %604 = vmatpush1.bf16.msra.mxu0 %v450
    %605 = vmatprep.subr.bf16.mxu0 0
    %606 = vmatpush1.bf16.msra.mxu0 %v451
    %607 = vmatprep.subr.bf16.mxu0 0
    %608 = vmatpush1.bf16.msra.mxu0 %v452
    %609 = vmatprep.subr.bf16.mxu0 0
    %610 = vmatpush1.bf16.msra.mxu0 %v453
    %611 = vmatprep.subr.bf16.mxu0 0
    %612 = vmatpush1.bf16.msra.mxu0 %v454
    %613 = vmatprep.subr.bf16.mxu0 0
    %614 = vmatpush1.bf16.msra.mxu0 %v455
    %615 = vmatprep.subr.bf16.mxu0 0
    %616 = vmatpush1.bf16.msra.mxu0 %v456
    %617 = vmatprep.mubr.bf16.mxu0 %v113
    %618 = vmatmul.mubr.bf16.gmra.mrb[0].mxu0 %v112
    %v619 = vpop.f32.mrb[0].mxu0
    %v620 = vadd.f32 %v580, %v619
    %v621 = vpop.f32.mrb[0].mxu0
    %v622 = vpop.f32.mrb[0].mxu0
    %v623 = vpop.f32.mrb[0].mxu0
    %624 = vdwg.mxu0
    %v625 = vmul.f32 %v620, %v620
    %vm626 = vcmask 517120
    %v627 = vsel %vm626, %v625, 0.0
    %628 = vadd.xlane.f32.xlu0 %v627
    %v629 = vpop.xlane.xlu0 %628
    %v630 = vadd.f32 %v629, 1e-12
    %v631 = vrsqrt.pop %v630
    %v632 = vmul.f32 %v620, %v631
    %634 = vrot.lane.b32.xlu0 %v625, 64
    %v635 = vpop.permute.xlu0 %634
    %v637 = vsel %vm626, %v635, 0.0
    %638 = vadd.xlane.f32.xlu0 %v637
    %v639 = vpop.xlane.xlu0 %638
    %v640 = vadd.f32 %v639, 1e-12
    %v641 = vrsqrt.pop %v640
    %v642 = vmul.f32 %v620, %v641
    %v643 = vpack.c.bf16 %v632, %v632
    %v644 = vld [vmem:[%s3] sm:$0xf]
    %v645 = vld [vmem:[%s3 + $0x4] sm:$0xf]
    %v646 = vld [vmem:[%s3 + $0x8] sm:$0xf]
    %v647 = vld [vmem:[%s3 + $0xc] sm:$0xf]
    %v648 = vld [vmem:[%s3 + $0x10] sm:$0xf]
    %v649 = vld [vmem:[%s3 + $0x14] sm:$0xf]
    %v650 = vld [vmem:[%s3 + $0x18] sm:$0xf]
    %v651 = vld [vmem:[%s3 + $0x1c] sm:$0xf]
    %v652 = vpack.c.bf16 %v642, %v642
    %v653 = vld [vmem:[#allocation6] sm:$0xf]
    %v654 = vld [vmem:[#allocation6 + $0x4] sm:$0xf]
    %v655 = vld [vmem:[#allocation6 + $0x8] sm:$0xf]
    %v656 = vld [vmem:[#allocation6 + $0xc] sm:$0xf]
    %v657 = vld [vmem:[#allocation6 + $0x10] sm:$0xf]
    %v658 = vld [vmem:[#allocation6 + $0x14] sm:$0xf]
    %v659 = vld [vmem:[#allocation6 + $0x18] sm:$0xf]
    %v660 = vld [vmem:[#allocation6 + $0x1c] sm:$0xf]
    %662 = vrot.lane.b32.xlu0 %v652, 64
    %v663 = vpop.permute.xlu0 %662
    %v672 = vunpack.c.l.b16 %v653
    %v673 = vunpack.c.l.b16 %v654
    %v674 = vunpack.c.l.b16 %v655
    %v675 = vunpack.c.l.b16 %v656
    %v676 = vunpack.c.l.b16 %v657
    %v677 = vunpack.c.l.b16 %v658
    %v678 = vunpack.c.l.b16 %v659
    %v679 = vunpack.c.l.b16 %v660
    %v680 = vpack.c.b16 %v673, %v672
    %v681 = vpack.c.b16 %v675, %v674
    %v682 = vpack.c.b16 %v677, %v676
    %v683 = vpack.c.b16 %v679, %v678
    %vm688 = vcmask 523264
    %v690 = vsel %vm688, %v663, 0
    %692 = vmatprep.subr.bf16.mxu0 0
    %693 = vmatpush1.bf16.msra.mxu0 %v680
    %694 = vmatprep.subr.bf16.mxu0 0
    %695 = vmatpush1.bf16.msra.mxu0 %v681
    %696 = vmatprep.subr.bf16.mxu0 0
    %697 = vmatpush1.bf16.msra.mxu0 %v682
    %698 = vmatprep.subr.bf16.mxu0 0
    %699 = vmatpush1.bf16.msra.mxu0 %v683
    %700 = vmatprep.subr.bf16.mxu0 0
    %701 = vmatpush1.bf16.msra.mxu0 0
    %702 = vmatprep.subr.bf16.mxu0 0
    %703 = vmatpush1.bf16.msra.mxu0 0
    %704 = vmatprep.subr.bf16.mxu0 0
    %705 = vmatpush1.bf16.msra.mxu0 0
    %706 = vmatprep.subr.bf16.mxu0 0
    %707 = vmatpush1.bf16.msra.mxu0 0
    %708 = vmatprep.subr.bf16.mxu0 0
    %709 = vmatpush1.bf16.msra.mxu0 0
    %710 = vmatprep.subr.bf16.mxu0 0
    %711 = vmatpush1.bf16.msra.mxu0 0
    %712 = vmatprep.subr.bf16.mxu0 0
    %713 = vmatpush1.bf16.msra.mxu0 0
    %714 = vmatprep.subr.bf16.mxu0 0
    %715 = vmatpush1.bf16.msra.mxu0 0
    %716 = vmatprep.subr.bf16.mxu0 0
    %717 = vmatpush1.bf16.msra.mxu0 0
    %718 = vmatprep.subr.bf16.mxu0 0
    %719 = vmatpush1.bf16.msra.mxu0 0
    %720 = vmatprep.subr.bf16.mxu0 0
    %721 = vmatpush1.bf16.msra.mxu0 0
    %722 = vmatprep.subr.bf16.mxu0 0
    %723 = vmatpush1.bf16.msra.mxu0 0
    %724 = vmatprep.mubr.bf16.mxu0 0
    %725 = vmatmul.mubr.bf16.gmra.mrb[0].mxu0 %v690
    %v726 = vpop.f32.mrb[0].mxu0
    %v727 = vadd.f32 0.0, %v726
    %v728 = vpop.f32.mrb[0].mxu0
    %v729 = vpop.f32.mrb[0].mxu0
    %v730 = vpop.f32.mrb[0].mxu0
    %731 = vdwg.mxu0
    %v740 = vunpack.c.l.b16 %v644
    %v741 = vunpack.c.l.b16 %v645
    %v742 = vunpack.c.l.b16 %v646
    %v743 = vunpack.c.l.b16 %v647
    %v744 = vunpack.c.l.b16 %v648
    %v745 = vunpack.c.l.b16 %v649
    %v746 = vunpack.c.l.b16 %v650
    %v747 = vunpack.c.l.b16 %v651
    %v748 = vpack.c.b16 %v741, %v740
    %v749 = vpack.c.b16 %v743, %v742
    %v750 = vpack.c.b16 %v745, %v744
    %v751 = vpack.c.b16 %v747, %v746
    %v757 = vsel %vm688, %v643, 0
    %759 = vmatprep.subr.bf16.mxu0 0
    %760 = vmatpush1.bf16.msra.mxu0 %v748
    %761 = vmatprep.subr.bf16.mxu0 0
    %762 = vmatpush1.bf16.msra.mxu0 %v749
    %763 = vmatprep.subr.bf16.mxu0 0
    %764 = vmatpush1.bf16.msra.mxu0 %v750
    %765 = vmatprep.subr.bf16.mxu0 0
    %766 = vmatpush1.bf16.msra.mxu0 %v751
    %767 = vmatprep.subr.bf16.mxu0 0
    %768 = vmatpush1.bf16.msra.mxu0 0
    %769 = vmatprep.subr.bf16.mxu0 0
    %770 = vmatpush1.bf16.msra.mxu0 0
    %771 = vmatprep.subr.bf16.mxu0 0
    %772 = vmatpush1.bf16.msra.mxu0 0
    %773 = vmatprep.subr.bf16.mxu0 0
    %774 = vmatpush1.bf16.msra.mxu0 0
    %775 = vmatprep.subr.bf16.mxu0 0
    %776 = vmatpush1.bf16.msra.mxu0 0
    %777 = vmatprep.subr.bf16.mxu0 0
    %778 = vmatpush1.bf16.msra.mxu0 0
    %779 = vmatprep.subr.bf16.mxu0 0
    %780 = vmatpush1.bf16.msra.mxu0 0
    %781 = vmatprep.subr.bf16.mxu0 0
    %782 = vmatpush1.bf16.msra.mxu0 0
    %783 = vmatprep.subr.bf16.mxu0 0
    %784 = vmatpush1.bf16.msra.mxu0 0
    %785 = vmatprep.subr.bf16.mxu0 0
    %786 = vmatpush1.bf16.msra.mxu0 0
    %787 = vmatprep.subr.bf16.mxu0 0
    %788 = vmatpush1.bf16.msra.mxu0 0
    %789 = vmatprep.subr.bf16.mxu0 0
    %790 = vmatpush1.bf16.msra.mxu0 0
    %791 = vmatprep.mubr.bf16.mxu0 0
    %792 = vmatmul.mubr.bf16.gmra.mrb[0].mxu0 %v757
    %v793 = vpop.f32.mrb[0].mxu0
    %v794 = vadd.f32 %v727, %v793
    %v795 = vpop.f32.mrb[0].mxu0
    %v796 = vpop.f32.mrb[0].mxu0
    %v797 = vpop.f32.mrb[0].mxu0
    %798 = vdwg.mxu0
    %v799 = vld [vmem:[%s5] sm:$0x1]
    %v801 = vlaneseq
    %v802 = vshrl.u32 %v801, 7
    %v803 = vsub.s32 0, %v802
    %v804 = vrot.slane %v799, %v803
    %v806 = vadd.f32 %v794, %v804
    %v807 = vmax.f32 %v806, 0.0
    %v808 = vld [vmem:[%s6] sm:$0x1]
    %v810 = vlaneseq
    %v811 = vshrl.u32 %v810, 7
    %v812 = vsub.s32 0, %v811
    %v813 = vrot.slane %v808, %v812
    %v815 = vmul.f32 %v807, %v813
    %v816 = vsel %vm626, %v815, 0.0
    %817 = vadd.xlane.f32.xlu0 %v816
    %v818 = vpop.xlane.xlu0 %817
    %v819 = vld [vmem:[#allocation2] sm:$0x1]
    %v821 = vlaneseq
    %v822 = vshrl.u32 %v821, 7
    %v823 = vsub.s32 0, %v822
    %v824 = vrot.slane %v819, %v823
    %v826 = vadd.f32 %v818, %v824
    %v827 = vxor.u32 %v826, 2147483648
    %v828 = vmul.f32 %v827, 1.442695
    %v829 = vpow.pop %v828
    %v830 = vadd.f32 %v829, 1.0
    %v831 = vrcp.pop %v830
    %v832 = vmul.f32 1.0, %v831
    %834 = vset.pattern.permute.xlu0 0
    %835 = vperm.xlu0 %834, %v832
    %v836 = vpop.permute.xlu0 %835
    %v838 = vmul.f32 %v836, %v632
    %v839 = vsub.f32 1.0, %v832
    %841 = vset.pattern.permute.xlu0 0
    %842 = vperm.xlu0 %841, %v839
    %v843 = vpop.permute.xlu0 %842
    %v845 = vmul.f32 %v843, %v642
    %847 = vrot.lane.b32.xlu0 %v845, 64
    %v848 = vpop.permute.xlu0 %847
    %v850 = vadd.f32 %v838, %v848
    %v851 = vmul.f32 %v632, 0.7
    %v852 = vmul.f32 %v850, 0.3
    %v853 = vadd.f32 %v851, %v852
    %v854 = vpack.c.bf16 %v853, %v853
    %v855 = vld [vmem:[%s8] sm:$0xf]
    %v856 = vld [vmem:[%s8 + $0x4] sm:$0xf]
    %v857 = vld [vmem:[%s8 + $0x8] sm:$0xf]
    %v858 = vld [vmem:[%s8 + $0xc] sm:$0xf]
    %v859 = vld [vmem:[%s8 + $0x10] sm:$0xf]
    %v860 = vld [vmem:[%s8 + $0x14] sm:$0xf]
    %v861 = vld [vmem:[%s8 + $0x18] sm:$0xf]
    %v862 = vld [vmem:[%s8 + $0x1c] sm:$0xf]
    %v863 = vld [vmem:[%s9] sm:$0x1]
    %v865 = vlaneseq
    %v866 = vshrl.u32 %v865, 7
    %v867 = vsub.s32 0, %v866
    %v868 = vrot.slane %v863, %v867
    %v878 = vunpack.c.l.b16 %v855
    %v879 = vunpack.c.l.b16 %v856
    %v880 = vunpack.c.l.b16 %v857
    %v881 = vunpack.c.l.b16 %v858
    %v882 = vunpack.c.l.b16 %v859
    %v883 = vunpack.c.l.b16 %v860
    %v884 = vunpack.c.l.b16 %v861
    %v885 = vunpack.c.l.b16 %v862
    %v886 = vpack.c.b16 %v879, %v878
    %v887 = vpack.c.b16 %v881, %v880
    %v888 = vpack.c.b16 %v883, %v882
    %v889 = vpack.c.b16 %v885, %v884
    %v895 = vsel %vm688, %v854, 0
    %897 = vmatprep.subr.bf16.mxu0 0
    %898 = vmatpush1.bf16.msra.mxu0 %v886
    %899 = vmatprep.subr.bf16.mxu0 0
    %900 = vmatpush1.bf16.msra.mxu0 %v887
    %901 = vmatprep.subr.bf16.mxu0 0
    %902 = vmatpush1.bf16.msra.mxu0 %v888
    %903 = vmatprep.subr.bf16.mxu0 0
    %904 = vmatpush1.bf16.msra.mxu0 %v889
    %905 = vmatprep.subr.bf16.mxu0 0
    %906 = vmatpush1.bf16.msra.mxu0 0
    %907 = vmatprep.subr.bf16.mxu0 0
    %908 = vmatpush1.bf16.msra.mxu0 0
    %909 = vmatprep.subr.bf16.mxu0 0
    %910 = vmatpush1.bf16.msra.mxu0 0
    %911 = vmatprep.subr.bf16.mxu0 0
    %912 = vmatpush1.bf16.msra.mxu0 0
    %913 = vmatprep.subr.bf16.mxu0 0
    %914 = vmatpush1.bf16.msra.mxu0 0
    %915 = vmatprep.subr.bf16.mxu0 0
    %916 = vmatpush1.bf16.msra.mxu0 0
    %917 = vmatprep.subr.bf16.mxu0 0
    %918 = vmatpush1.bf16.msra.mxu0 0
    %919 = vmatprep.subr.bf16.mxu0 0
    %920 = vmatpush1.bf16.msra.mxu0 0
    %921 = vmatprep.subr.bf16.mxu0 0
    %922 = vmatpush1.bf16.msra.mxu0 0
    %923 = vmatprep.subr.bf16.mxu0 0
    %924 = vmatpush1.bf16.msra.mxu0 0
    %925 = vmatprep.subr.bf16.mxu0 0
    %926 = vmatpush1.bf16.msra.mxu0 0
    %927 = vmatprep.subr.bf16.mxu0 0
    %928 = vmatpush1.bf16.msra.mxu0 0
    %929 = vmatprep.mubr.bf16.mxu0 0
    %930 = vmatmul.mubr.bf16.gmra.mrb[0].mxu0 %v895
    %v931 = vpop.f32.mrb[0].mxu0
    %v932 = vadd.f32 %v868, %v931
    %v933 = vpop.f32.mrb[0].mxu0
    %v934 = vpop.f32.mrb[0].mxu0
    %v935 = vpop.f32.mrb[0].mxu0
    %936 = vdwg.mxu0
    %v937 = vmax.f32 %v932, 0.0
    %v938 = vpack.c.bf16 %v937, %v937
    %v939 = vld [vmem:[%s10] sm:$0x3]
    %v940 = vld [vmem:[%s11] sm:$0x1]
    %v942 = vlaneseq
    %v943 = vshrl.u32 %v942, 7
    %v944 = vsub.s32 0, %v943
    %v945 = vrot.slane %v940, %v944
    %vm947 = vcmask 31744
    %v949 = vsel %vm947, %v938, 0
    %vm951 = vcmask 1041408
    %v953 = vsel %vm951, %v939, 0
    %955 = vmatprep.subr.bf16.mxu0 0
    %956 = vmatpush1.bf16.msra.mxu0 %v953
    %957 = vmatprep.subr.bf16.mxu0 0
    %958 = vmatpush1.bf16.msra.mxu0 0
    %959 = vmatprep.subr.bf16.mxu0 0
    %960 = vmatpush1.bf16.msra.mxu0 0
    %961 = vmatprep.subr.bf16.mxu0 0
    %962 = vmatpush1.bf16.msra.mxu0 0
    %963 = vmatprep.subr.bf16.mxu0 0
    %964 = vmatpush1.bf16.msra.mxu0 0
    %965 = vmatprep.subr.bf16.mxu0 0
    %966 = vmatpush1.bf16.msra.mxu0 0
    %967 = vmatprep.subr.bf16.mxu0 0
    %968 = vmatpush1.bf16.msra.mxu0 0
    %969 = vmatprep.subr.bf16.mxu0 0
    %970 = vmatpush1.bf16.msra.mxu0 0
    %971 = vmatprep.subr.bf16.mxu0 0
    %972 = vmatpush1.bf16.msra.mxu0 0
    %973 = vmatprep.subr.bf16.mxu0 0
    %974 = vmatpush1.bf16.msra.mxu0 0
    %975 = vmatprep.subr.bf16.mxu0 0
    %976 = vmatpush1.bf16.msra.mxu0 0
    %977 = vmatprep.subr.bf16.mxu0 0
    %978 = vmatpush1.bf16.msra.mxu0 0
    %979 = vmatprep.subr.bf16.mxu0 0
    %980 = vmatpush1.bf16.msra.mxu0 0
    %981 = vmatprep.subr.bf16.mxu0 0
    %982 = vmatpush1.bf16.msra.mxu0 0
    %983 = vmatprep.subr.bf16.mxu0 0
    %984 = vmatpush1.bf16.msra.mxu0 0
    %985 = vmatprep.subr.bf16.mxu0 0
    %986 = vmatpush1.bf16.msra.mxu0 0
    %987 = vmatprep.mubr.bf16.mxu0 0
    %988 = vmatmul.mubr.bf16.gmra.mrb[0].mxu0 %v949
    %v989 = vpop.f32.mrb[0].mxu0
    %v990 = vadd.f32 %v945, %v989
    %v991 = vpop.f32.mrb[0].mxu0
    %v992 = vpop.f32.mrb[0].mxu0
    %v993 = vpop.f32.mrb[0].mxu0
    %994 = vdwg.mxu0
    %996 = vrot.lane.b32.xlu0 %v990, 64
    %v997 = vpop.permute.xlu0 %996
    %v999 = vsel %vm688, %v632, %v997
    %1000 = vst [vmem:[#allocation8] sm:$0x3] %v999
    // Predicated region
    $region58: #{tpu_custom_call.1} parent=1 // pred_check
      _
    $region59: #{tpu_custom_call.1} parent=1 // pred_check_branch
      %1002 = sbr.rel (0) target = $region61
    $region60: #{tpu_custom_call.1} parent=1 // pred_region
      %s1004 = ssub.s32 32, 32
      %1005 = vsyncadd [#allocation5], %s1004
      %s1007 = sshll.u32 [#allocation8], 4
      %s1008 = int_to_ptr.vmem [resolvable:$true] %s1007
      %1010 = dma.vmem_to_hbm [thread:$0]  %s1008, 32, %s12, [#allocation5]
    $region61: #{tpu_custom_call.1} parent=1 // pred_fallthru
      _
    // Predicated region
    $region62: #{tpu_custom_call.1} parent=1 // pred_check
      _
    $region63: #{tpu_custom_call.1} parent=1 // pred_check_branch
      %1012 = sbr.rel (0) target = $region65
    $region64: #{tpu_custom_call.1} parent=1 // pred_region
      %1013 = dma.done [#allocation5], 32
    $region65: #{tpu_custom_call.1} parent=1 // pred_fallthru
      _
    %1014 = vsyncpa [#allocation4], 1
    %1015 = vsyncpa [#allocation7], 1
    %1016 = vsyncpa [#allocation5], 1

</llo_original>
